<compile_context>
chip_gen: v5e
topology: v5e:2x2
jax: 0.10.0
libtpu: 0.0.40
codegen_flags: <defaults>
</compile_context>

<pallas_src>
import functools
import math

import jax
import jax.numpy as jnp
import numpy as np
from jax.experimental import pallas as pl
from jax.experimental.pallas import tpu as pltpu


# ---------------------------------------------------------------------------
# Parameter setup (mirrors the PyTorch module's cos_sin inv_freq construction).
# ---------------------------------------------------------------------------
def _find_correction_factor(num_rotations, dim, base, max_position_embeddings):
    return dim * math.log(max_position_embeddings / (num_rotations * 2 * math.pi)) / (
        2 * math.log(base)
    )


def _find_correction_range(low_rot, high_rot, dim, base, max_position_embeddings):
    low = math.floor(_find_correction_factor(low_rot, dim, base, max_position_embeddings))
    high = math.ceil(_find_correction_factor(high_rot, dim, base, max_position_embeddings))
    return (max(low, 0), min(high, dim - 1))


def _find_newbase_ntk(dim, base, scale):
    return base * scale ** (dim / (dim - 2))


def _linear_ramp_mask(lo, hi, dim):
    if lo == hi:
        hi += 0.001
    linear = (np.arange(dim, dtype=np.float32) - lo) / (hi - lo)
    return np.clip(linear, 0.0, 1.0)


def compute_inv_freq(
    head_dim,
    seq_len,
    base=10000,
    max_position_embeddings=2048,
    ntk_factor=1.0,
    extrapolation_factor=1.0,
):
    idx = np.arange(0, head_dim, 2, dtype=np.float32)
    inv_freq = 1.0 / base ** (idx / head_dim)
    if seq_len >= max_position_embeddings:
        beta_0, beta_1 = 1.25, 0.75
        gamma_0, gamma_1 = 16, 2
        scale = seq_len / max_position_embeddings

        inv_freq_base = 1.0 / base ** (idx / head_dim)
        inv_freq_linear = 1.0 / (scale * base ** (idx / head_dim))
        inv_freq_ntk = 1.0 / _find_newbase_ntk(head_dim, base, scale) ** (idx / head_dim)

        low, high = _find_correction_range(beta_0, beta_1, head_dim, base, max_position_embeddings)
        mask = (1.0 - _linear_ramp_mask(low, high, head_dim // 2)) * ntk_factor
        inv_freq = inv_freq_linear * (1.0 - mask) + inv_freq_ntk * mask

        low, high = _find_correction_range(gamma_0, gamma_1, head_dim, base, max_position_embeddings)
        mask = (1.0 - _linear_ramp_mask(low, high, head_dim // 2)) * extrapolation_factor
        inv_freq = inv_freq * (1.0 - mask) + inv_freq_base * mask
    return inv_freq.astype(np.float32)


# ---------------------------------------------------------------------------
# Pallas kernel: out = x*cos + roll(x, L-half)*(-sin|0) + roll(x, half)*(0|+sin)
# The sin tables are zero on the lanes the corresponding roll term must not
# touch, so wrap-around lanes of the global roll contribute exactly 0 and the
# per-position rotate_half is reproduced even in the packed (P > 1) layout.
# ---------------------------------------------------------------------------
def rope_kernel(cos_ref, sneg_ref, spos_ref, q_ref, k_ref, qo_ref, ko_ref,
                *, half, lanes):
    cos_t = cos_ref[...]          # (TR, L) f32
    sneg = sneg_ref[...]          # (TR, L) f32, = -sin on c<half lanes, 0 else
    spos = spos_ref[...]          # (TR, L) f32, = +sin on c>=half lanes, 0 else

    axis = cos_t.ndim - 1
    shift_pos = half              # roll(x, half)[l]   = x[(l - half) % L]
    shift_neg = lanes - half      # roll(x, L-half)[l] = x[(l + half) % L]

    def rotate(x):
        x = x.astype(jnp.float32)
        r_pos = pltpu.roll(x, shift_pos, axis)
        r_neg = r_pos if shift_neg == shift_pos else pltpu.roll(x, shift_neg, axis)
        return x * cos_t + r_neg * sneg + r_pos * spos

    qo_ref[...] = rotate(q_ref[...]).astype(qo_ref.dtype)
    ko_ref[...] = rotate(k_ref[...]).astype(ko_ref.dtype)


def _pick_row_tile(num_rows, target=512):
    """Largest multiple-of-8 divisor of num_rows <= target (or full extent)."""
    if num_rows <= target:
        return num_rows
    for t in range(target - target % 8, 7, -8):
        if num_rows % t == 0:
            return t
    return num_rows  # TODO(synk): ragged row counts fall back to one full block


def falcon_rope(q, k, inv_freq):
    B, S, D = q.shape
    half = D // 2
    inv_freq = jnp.asarray(inv_freq, dtype=jnp.float32)

    # Lane packing: put P consecutive positions into one 128-lane row when
    # head_dim < 128 (zero-copy reshape), so stores are unmasked full-lane.
    if D % 128 == 0:
        P = 1
    elif 128 % D == 0 and S % (128 // D) == 0:
        P = 128 // D
    else:
        P = 1  # TODO(synk): head_dims not dividing/divisible by 128 stay lane-sparse
    L = P * D
    R = S // P

    # cos/sin tables built once in the wrapper (trig over S x half only),
    # laid out to match the packed q/k layout, sign + zero masks baked in.
    t = jnp.arange(S, dtype=jnp.float32)
    freqs = t[:, None] * inv_freq[None, :]                    # (S, half)
    cos_h = jnp.cos(freqs)
    sin_h = jnp.sin(freqs)
    zeros = jnp.zeros_like(sin_h)
    cos_t = jnp.concatenate([cos_h, cos_h], axis=-1).reshape(R, L)
    sin_neg = jnp.concatenate([-sin_h, zeros], axis=-1).reshape(R, L)
    sin_pos = jnp.concatenate([zeros, sin_h], axis=-1).reshape(R, L)

    qp = q.reshape(B, R, L)
    kp = k.reshape(B, R, L)

    # Seq tiling: ~TR*L*4B per block; 7 blocks x 2 pipeline buffers stays a few
    # MiB — comfortably inside v7x's 64 MiB VMEM / default scoped limits.
    TR = _pick_row_tile(R)
    grid = (R // TR, B)  # batch innermost -> cos/sin block reused across batch

    kernel = functools.partial(rope_kernel, half=half, lanes=L)
    row_major = lambda r, b: (r, 0)            # tables: same block for all b
    per_batch = lambda r, b: (b, r, 0)         # q/k/out blocks

    qo, ko = pl.pallas_call(
        kernel,
        out_shape=[
            jax.ShapeDtypeStruct((B, R, L), q.dtype),
            jax.ShapeDtypeStruct((B, R, L), k.dtype),
        ],
        grid=grid,
        in_specs=[
            pl.BlockSpec((TR, L), row_major),        # cos
            pl.BlockSpec((TR, L), row_major),        # -sin | 0
            pl.BlockSpec((TR, L), row_major),        # 0 | +sin
            pl.BlockSpec((None, TR, L), per_batch),  # q
            pl.BlockSpec((None, TR, L), per_batch),  # k
        ],
        out_specs=[
            pl.BlockSpec((None, TR, L), per_batch),
            pl.BlockSpec((None, TR, L), per_batch),
        ],
        compiler_params=pltpu.CompilerParams(
            dimension_semantics=("parallel", "parallel")),
    )(cos_t, sin_neg, sin_pos, qp, kp)

    return qo.reshape(B, S, D), ko.reshape(B, S, D)


# ---------------------------------------------------------------------------
# Pure-JAX reference (mirrors the PyTorch forward) for verification.
# ---------------------------------------------------------------------------
def ref_rope(q, k, inv_freq):
    S, D = q.shape[1], q.shape[2]
    t = jnp.arange(S, dtype=jnp.float32)
    freqs = jnp.einsum("i,j->ij", t, jnp.asarray(inv_freq, jnp.float32))
    emb = jnp.concatenate([freqs, freqs], axis=-1)
    cos = jnp.cos(emb)[None, :, :]
    sin = jnp.sin(emb)[None, :, :]

    def rotate_half(x):
        x1, x2 = x[..., : D // 2], x[..., D // 2:]
        return jnp.concatenate([-x2, x1], axis=-1)

    return q * cos + rotate_half(q) * sin, k * cos + rotate_half(k) * sin


def _run_case(B, S, D, max_pos, seed):
    key = jax.random.PRNGKey(seed)
    kq, kk = jax.random.split(key)
    q = jax.random.normal(kq, (B, S, D), dtype=jnp.float32)
    k = jax.random.normal(kk, (B, S, D), dtype=jnp.float32)

    # max_pos < S triggers the dynamic part-NTK inv_freq rescaling path.
    inv_freq = compute_inv_freq(
        D, S, base=10000, max_position_embeddings=max_pos,
        ntk_factor=1.0, extrapolation_factor=1.0,
    )

    q_out, k_out = falcon_rope(q, k, inv_freq)
    jax.block_until_ready((q_out, k_out))

    q_ref, k_ref = ref_rope(q, k, inv_freq)
    np.testing.assert_allclose(np.asarray(q_out), np.asarray(q_ref), rtol=1e-5, atol=1e-5)
    np.testing.assert_allclose(np.asarray(k_out), np.asarray(k_ref), rtol=1e-5, atol=1e-5)


if __name__ == "__main__":
    # Small shapes consistent with the module: batch(=batch*heads), seq, head_dim.
    _run_case(B=2, S=8, D=32, max_pos=4, seed=0)     # P=4 packed lanes
    _run_case(B=2, S=16, D=64, max_pos=8, seed=0)    # Falcon head_dim=64, P=2
    print("KERNEL_OK")
</pallas_src>

<mosaic_0001>
module attributes {stable_mosaic.version = 11 : i64} {
  func.func @rope_kernel(%arg0: i32, %arg1: i32, %arg2: memref<2x128xf32, #tpu.memory_space<vmem>>, %arg3: memref<2x128xf32, #tpu.memory_space<vmem>>, %arg4: memref<2x128xf32, #tpu.memory_space<vmem>>, %arg5: memref<1x2x128xf32, #tpu.memory_space<vmem>>, %arg6: memref<1x2x128xf32, #tpu.memory_space<vmem>>, %arg7: memref<1x2x128xf32, #tpu.memory_space<vmem>>, %arg8: memref<1x2x128xf32, #tpu.memory_space<vmem>>) attributes {dimension_semantics = [#tpu.dimension_semantics<parallel>, #tpu.dimension_semantics<parallel>], iteration_bounds = array<i64: 1, 2>, scalar_prefetch = 0 : i64, scratch_operands = 0 : i64, tpu.core_type = #tpu.core_type<tc>, window_params = [{transform_indices = @transform_0, window_bounds = array<i64: 2, 128>}, {transform_indices = @transform_1, window_bounds = array<i64: 2, 128>}, {transform_indices = @transform_2, window_bounds = array<i64: 2, 128>}, {transform_indices = @transform_3, window_bounds = array<i64: 1, 2, 128>}, {transform_indices = @transform_4, window_bounds = array<i64: 1, 2, 128>}, {transform_indices = @transform_5, window_bounds = array<i64: 1, 2, 128>}, {transform_indices = @transform_6, window_bounds = array<i64: 1, 2, 128>}]} {
    %c0 = arith.constant 0 : index
    %c0_0 = arith.constant 0 : index
    %0 = vector.load %arg2[%c0, %c0_0] : memref<2x128xf32, #tpu.memory_space<vmem>>, vector<2x128xf32>
    %c0_1 = arith.constant 0 : index
    %c0_2 = arith.constant 0 : index
    %1 = vector.load %arg3[%c0_1, %c0_2] : memref<2x128xf32, #tpu.memory_space<vmem>>, vector<2x128xf32>
    %c0_3 = arith.constant 0 : index
    %c0_4 = arith.constant 0 : index
    %2 = vector.load %arg4[%c0_3, %c0_4] : memref<2x128xf32, #tpu.memory_space<vmem>>, vector<2x128xf32>
    %c0_5 = arith.constant 0 : index
    %c0_6 = arith.constant 0 : index
    %c0_7 = arith.constant 0 : index
    %3 = vector.load %arg5[%c0_5, %c0_6, %c0_7] : memref<1x2x128xf32, #tpu.memory_space<vmem>>, vector<1x2x128xf32>
    %4 = vector.shape_cast %3 : vector<1x2x128xf32> to vector<2x128xf32>
    %c16_i32 = arith.constant 16 : i32
    %5 = tpu.dynamic_rotate %4 by %c16_i32 dim 1 : vector<2x128xf32>, i32 -> vector<2x128xf32>
    %c112_i32 = arith.constant 112 : i32
    %6 = tpu.dynamic_rotate %4 by %c112_i32 dim 1 : vector<2x128xf32>, i32 -> vector<2x128xf32>
    %7 = arith.mulf %4, %0 : vector<2x128xf32>
    %8 = arith.mulf %6, %1 : vector<2x128xf32>
    %9 = arith.addf %7, %8 : vector<2x128xf32>
    %10 = arith.mulf %5, %2 : vector<2x128xf32>
    %11 = arith.addf %9, %10 : vector<2x128xf32>
    %c0_8 = arith.constant 0 : index
    %c0_9 = arith.constant 0 : index
    %c0_10 = arith.constant 0 : index
    %12 = vector.load %arg7[%c0_8, %c0_9, %c0_10] : memref<1x2x128xf32, #tpu.memory_space<vmem>>, vector<1x2x128xf32>
    %13 = vector.shape_cast %12 : vector<1x2x128xf32> to vector<2x128xf32>
    %14 = vector.shape_cast %11 : vector<2x128xf32> to vector<1x2x128xf32>
    tpu.vector_store %arg7[%c0_8, %c0_9, %c0_10], %14 {strides = array<i32>} : memref<1x2x128xf32, #tpu.memory_space<vmem>>, vector<1x2x128xf32>,
    %c0_11 = arith.constant 0 : index
    %c0_12 = arith.constant 0 : index
    %c0_13 = arith.constant 0 : index
    %15 = vector.load %arg6[%c0_11, %c0_12, %c0_13] : memref<1x2x128xf32, #tpu.memory_space<vmem>>, vector<1x2x128xf32>
    %16 = vector.shape_cast %15 : vector<1x2x128xf32> to vector<2x128xf32>
    %c16_i32_14 = arith.constant 16 : i32
    %17 = tpu.dynamic_rotate %16 by %c16_i32_14 dim 1 : vector<2x128xf32>, i32 -> vector<2x128xf32>
    %c112_i32_15 = arith.constant 112 : i32
    %18 = tpu.dynamic_rotate %16 by %c112_i32_15 dim 1 : vector<2x128xf32>, i32 -> vector<2x128xf32>
    %19 = arith.mulf %16, %0 : vector<2x128xf32>
    %20 = arith.mulf %18, %1 : vector<2x128xf32>
    %21 = arith.addf %19, %20 : vector<2x128xf32>
    %22 = arith.mulf %17, %2 : vector<2x128xf32>
    %23 = arith.addf %21, %22 : vector<2x128xf32>
    %c0_16 = arith.constant 0 : index
    %c0_17 = arith.constant 0 : index
    %c0_18 = arith.constant 0 : index
    %24 = vector.load %arg8[%c0_16, %c0_17, %c0_18] : memref<1x2x128xf32, #tpu.memory_space<vmem>>, vector<1x2x128xf32>
    %25 = vector.shape_cast %24 : vector<1x2x128xf32> to vector<2x128xf32>
    %26 = vector.shape_cast %23 : vector<2x128xf32> to vector<1x2x128xf32>
    tpu.vector_store %arg8[%c0_16, %c0_17, %c0_18], %26 {strides = array<i32>} : memref<1x2x128xf32, #tpu.memory_space<vmem>>, vector<1x2x128xf32>,
    return
  }
  func.func @transform_0(%arg0: i32, %arg1: i32) -> (i32, i32) {
    %c0_i32 = arith.constant 0 : i32
    %c0_i32_0 = arith.constant 0 : i32
    return %arg0, %c0_i32 : i32, i32
  }
  func.func @transform_1(%arg0: i32, %arg1: i32) -> (i32, i32) {
    %c0_i32 = arith.constant 0 : i32
    %c0_i32_0 = arith.constant 0 : i32
    return %arg0, %c0_i32 : i32, i32
  }
  func.func @transform_2(%arg0: i32, %arg1: i32) -> (i32, i32) {
    %c0_i32 = arith.constant 0 : i32
    %c0_i32_0 = arith.constant 0 : i32
    return %arg0, %c0_i32 : i32, i32
  }
  func.func @transform_3(%arg0: i32, %arg1: i32) -> (i32, i32, i32) {
    %c0_i32 = arith.constant 0 : i32
    %c0_i32_0 = arith.constant 0 : i32
    return %arg1, %arg0, %c0_i32 : i32, i32, i32
  }
  func.func @transform_4(%arg0: i32, %arg1: i32) -> (i32, i32, i32) {
    %c0_i32 = arith.constant 0 : i32
    %c0_i32_0 = arith.constant 0 : i32
    return %arg1, %arg0, %c0_i32 : i32, i32, i32
  }
  func.func @transform_5(%arg0: i32, %arg1: i32) -> (i32, i32, i32) {
    %c0_i32 = arith.constant 0 : i32
    %c0_i32_0 = arith.constant 0 : i32
    return %arg1, %arg0, %c0_i32 : i32, i32, i32
  }
  func.func @transform_6(%arg0: i32, %arg1: i32) -> (i32, i32, i32) {
    %c0_i32 = arith.constant 0 : i32
    %c0_i32_0 = arith.constant 0 : i32
    return %arg1, %arg0, %c0_i32 : i32, i32, i32
  }
}

</mosaic_0001>

<llo_original>
// kernel: tpu_custom_call.1
$region0: #{tpu_custom_call.1}
  #allocation0 [shape = 'u32[]', space=smem, size = 0x4, offset = 0x4, fixed_abs, tag = 'smem constant byte address 0x4 - core index']
  #allocation1 [shape = 'u32[72,128]{1,0:T(1,128)}', space=vmem, size = 0x9000, scoped, tag = 'internal scratch']
  %s0 = inlined_call_operand.hbm [shape: f32[2,128], index: 0, kind: input, shape index: {}]
  %s1 = inlined_call_operand.hbm [shape: f32[2,128], index: 1, kind: input, shape index: {}]
  %s2 = inlined_call_operand.hbm [shape: f32[2,128], index: 2, kind: input, shape index: {}]
  %s3 = inlined_call_operand.hbm [shape: f32[2,2,128], index: 3, kind: input, shape index: {}]
  %s4 = inlined_call_operand.hbm [shape: f32[2,2,128], index: 4, kind: input, shape index: {}]
  %s5 = inlined_call_operand.hbm [shape: f32[2,2,128], index: 5, kind: output, shape index: {0}]
  %s6 = inlined_call_operand.hbm [shape: f32[2,2,128], index: 6, kind: output, shape index: {1}]
  %7 = xla_tuple %s5, %s6
  %s8 = sld [smem:[#allocation0]]
  $region81: #{tpu_custom_call.1} parent=0
    _
  %s10 = ssub.s32 1, %s8
  %s11 = scalar_select 0, %s10, %s8
  $region1: #{tpu_custom_call.1} parent=0
    #allocation2 [shape = 'u8[1024]{0}', space=vmem, size = 0x400, scoped, tag = 'input window, operand 0, single buffered']
    #allocation3 [shape = 's32[2]{0}', space=sflag, size = 0x8, scoped, tag = 'scoped memory for tpu_custom_call.1']
    #allocation4 [shape = 's32[2]{0}', space=sflag, size = 0x8, scoped, tag = 'scoped memory for tpu_custom_call.1']
    #allocation5 [shape = 'u8[1024]{0}', space=vmem, size = 0x400, scoped, tag = 'input window, operand 1, single buffered']
    #allocation6 [shape = 's32[1]{0}', space=sflag, size = 0x4, scoped, tag = 'scoped memory for tpu_custom_call.1']
    #allocation7 [shape = 'u8[1024]{0}', space=vmem, size = 0x400, scoped, tag = 'input window, operand 2, single buffered']
    #allocation8 [shape = 'u8[2048]{0}', space=vmem, size = 0x800, scoped, tag = 'input window, operand 3']
    #allocation9 [shape = 's32[2]{0}', space=sflag, size = 0x8, scoped, tag = 'scoped memory for tpu_custom_call.1']
    #allocation10 [shape = 'u8[2048]{0}', space=vmem, size = 0x800, scoped, tag = 'input window, operand 4']
    #allocation11 [shape = 'u8[2048]{0}', space=vmem, size = 0x800, scoped, tag = 'output window, operand 0']
    #allocation12 [shape = 'u8[2048]{0}', space=vmem, size = 0x800, scoped, tag = 'output window, operand 1']
    #allocation13 [shape = 's32[2]{0}', space=sflag, size = 0x8, scoped, tag = 'scoped memory for tpu_custom_call.1']
    %12 = vsyncpa [#allocation3], 0
    %13 = vsyncpa [#allocation6], 0
    %14 = vsyncpa [#allocation9], 0
    %s15 = scalar_lea.sflag [#allocation9], 1
    %16 = vsyncpa %s15, 0
    %17 = vsyncpa [#allocation4], 0
    %s18 = scalar_lea.sflag [#allocation4], 1
    %19 = vsyncpa %s18, 0
    %20 = vsyncpa [#allocation13], 0
    %s21 = scalar_lea.sflag [#allocation13], 1
    %22 = vsyncpa %s21, 0
    loop: start=0, step=1, limit=4
    $region2: #{tpu_custom_call.1} parent=1 // loop_pre_header
      _
    $region3: #{tpu_custom_call.1} parent=1 // loop_header
      %s24 = sphi 0, %s28
      %p25 = scmp.ge.s32.totalorder %s24, 4
      %s31 = sphi 0, %s43
      %s32 = sphi 0, %s39
      %s33 = sphi 0, %s31
      %s34 = sphi 0, %s32
      %s35 = sphi 0, %s33
      %s36 = sphi 0, %s34
      %s46 = sphi 0, %s48
      %s49 = sphi 0, %s46
      %s50 = sphi 0, %s49
      %s66 = sphi 0, %s50
      %s72 = sphi 0, %s74
      %s75 = sphi 0, %s72
      %s76 = sphi 0, %s75
      %s92 = sphi 0, %s76
      %s98 = sphi 0, %s100
      %s101 = sphi 0, %s98
      %s102 = sphi 0, %s101
      %s118 = sphi 0, %s102
      %s126 = sphi 0, %s128
      %s129 = sphi 0, %s126
      %s130 = sphi 0, %s129
      %s146 = sphi 0, %s130
      %s154 = sphi 0, %s156
      %s157 = sphi 0, %s154
      %s158 = sphi 0, %s157
      %s174 = sphi 0, %s158
      %s182 = sphi 0, %s184
      %s185 = sphi 0, %s182
      %s186 = sphi 0, %s185
      %s202 = sphi 0, %s186
      %s210 = sphi 0, %s212
      %s213 = sphi 0, %s210
      %s214 = sphi 0, %s213
      %s230 = sphi 0, %s214
    $region4: #{tpu_custom_call.1} parent=1 // loop_header_branch
      %27 = sbr.rel (%p25) target = $region8
    $region5: #{tpu_custom_call.1} parent=1 // loop_body
      %s29 = ssub.s32 %s24, 1
      %s30 = ssub.s32 %s24, 2
      %s37 = sadd.s32 1, %s32
      %p38 = scmp.ge.s32.totalorder %s37, 2
      %s39 = scalar_select %p38, 0, %s37
      %s40 = sadd.s32 1, %s31
      %s41 = scalar_select %p38, %s40, %s31
      %p42 = scmp.ge.s32.totalorder %s41, 1
      %s43 = scalar_select %p42, 0, %s41
      %s44 = ssub.s32 %s31, %s43
      %p45 = scmp.eq.s32.totalorder %s44, 0
      %s47 = sadd.s32 %s46, 1
      %s48 = scalar_select %p45, %s46, %s47
      %p51 = pneg %p45
      %p52 = scmp.eq.s32.totalorder %s24, 1
      %p53 = por %p51, %p52
      %p54 = scmp.ne.s32.totalorder %s46, %s49
      %p55 = scmp.eq.s32.totalorder %s24, 0
      %p56 = por %p54, %p55
      %p57 = scmp.ne.s32.totalorder %s46, %s49
      %p58 = scmp.eq.s32.totalorder %s29, 1
      %p59 = por %p57, %p58
      %p60 = scmp.ne.s32.totalorder %s49, %s50
      %p61 = scmp.eq.s32.totalorder %s29, 0
      %p62 = por %p60, %p61
      %p63 = scmp.ne.s32.totalorder %s49, %s50
      %p64 = scmp.eq.s32.totalorder %s30, 1
      %p65 = por %p63, %p64
      %p67 = scmp.ne.s32.totalorder %s50, %s66
      %p68 = scmp.eq.s32.totalorder %s30, 0
      %p69 = por %p67, %p68
      %s70 = ssub.s32 %s31, %s43
      %p71 = scmp.eq.s32.totalorder %s70, 0
      %s73 = sadd.s32 %s72, 1
      %s74 = scalar_select %p71, %s72, %s73
      %p77 = pneg %p71
      %p78 = scmp.eq.s32.totalorder %s24, 1
      %p79 = por %p77, %p78
      %p80 = scmp.ne.s32.totalorder %s72, %s75
      %p81 = scmp.eq.s32.totalorder %s24, 0
      %p82 = por %p80, %p81
      %p83 = scmp.ne.s32.totalorder %s72, %s75
      %p84 = scmp.eq.s32.totalorder %s29, 1
      %p85 = por %p83, %p84
      %p86 = scmp.ne.s32.totalorder %s75, %s76
      %p87 = scmp.eq.s32.totalorder %s29, 0
      %p88 = por %p86, %p87
      %p89 = scmp.ne.s32.totalorder %s75, %s76
      %p90 = scmp.eq.s32.totalorder %s30, 1
      %p91 = por %p89, %p90
      %p93 = scmp.ne.s32.totalorder %s76, %s92
      %p94 = scmp.eq.s32.totalorder %s30, 0
      %p95 = por %p93, %p94
      %s96 = ssub.s32 %s31, %s43
      %p97 = scmp.eq.s32.totalorder %s96, 0
      %s99 = sadd.s32 %s98, 1
      %s100 = scalar_select %p97, %s98, %s99
      %p103 = pneg %p97
      %p104 = scmp.eq.s32.totalorder %s24, 1
      %p105 = por %p103, %p104
      %p106 = scmp.ne.s32.totalorder %s98, %s101
      %p107 = scmp.eq.s32.totalorder %s24, 0
      %p108 = por %p106, %p107
      %p109 = scmp.ne.s32.totalorder %s98, %s101
      %p110 = scmp.eq.s32.totalorder %s29, 1
      %p111 = por %p109, %p110
      %p112 = scmp.ne.s32.totalorder %s101, %s102
      %p113 = scmp.eq.s32.totalorder %s29, 0
      %p114 = por %p112, %p113
      %p115 = scmp.ne.s32.totalorder %s101, %s102
      %p116 = scmp.eq.s32.totalorder %s30, 1
      %p117 = por %p115, %p116
      %p119 = scmp.ne.s32.totalorder %s102, %s118
      %p120 = scmp.eq.s32.totalorder %s30, 0
      %p121 = por %p119, %p120
      %s122 = ssub.s32 %s32, %s39
      %s123 = ssub.s32 %s31, %s43
      %s124 = sor.u32 %s122, %s123
      %p125 = scmp.eq.s32.totalorder %s124, 0
      %s127 = sadd.s32 %s126, 1
      %s128 = scalar_select %p125, %s126, %s127
      %p131 = pneg %p125
      %p132 = scmp.eq.s32.totalorder %s24, 1
      %p133 = por %p131, %p132
      %p134 = scmp.ne.s32.totalorder %s126, %s129
      %p135 = scmp.eq.s32.totalorder %s24, 0
      %p136 = por %p134, %p135
      %p137 = scmp.ne.s32.totalorder %s126, %s129
      %p138 = scmp.eq.s32.totalorder %s29, 1
      %p139 = por %p137, %p138
      %p140 = scmp.ne.s32.totalorder %s129, %s130
      %p141 = scmp.eq.s32.totalorder %s29, 0
      %p142 = por %p140, %p141
      %p143 = scmp.ne.s32.totalorder %s129, %s130
      %p144 = scmp.eq.s32.totalorder %s30, 1
      %p145 = por %p143, %p144
      %p147 = scmp.ne.s32.totalorder %s130, %s146
      %p148 = scmp.eq.s32.totalorder %s30, 0
      %p149 = por %p147, %p148
      %s150 = ssub.s32 %s32, %s39
      %s151 = ssub.s32 %s31, %s43
      %s152 = sor.u32 %s150, %s151
      %p153 = scmp.eq.s32.totalorder %s152, 0
      %s155 = sadd.s32 %s154, 1
      %s156 = scalar_select %p153, %s154, %s155
      %p159 = pneg %p153
      %p160 = scmp.eq.s32.totalorder %s24, 1
      %p161 = por %p159, %p160
      %p162 = scmp.ne.s32.totalorder %s154, %s157
      %p163 = scmp.eq.s32.totalorder %s24, 0
      %p164 = por %p162, %p163
      %p165 = scmp.ne.s32.totalorder %s154, %s157
      %p166 = scmp.eq.s32.totalorder %s29, 1
      %p167 = por %p165, %p166
      %p168 = scmp.ne.s32.totalorder %s157, %s158
      %p169 = scmp.eq.s32.totalorder %s29, 0
      %p170 = por %p168, %p169
      %p171 = scmp.ne.s32.totalorder %s157, %s158
      %p172 = scmp.eq.s32.totalorder %s30, 1
      %p173 = por %p171, %p172
      %p175 = scmp.ne.s32.totalorder %s158, %s174
      %p176 = scmp.eq.s32.totalorder %s30, 0
      %p177 = por %p175, %p176
      %s178 = ssub.s32 %s32, %s39
      %s179 = ssub.s32 %s31, %s43
      %s180 = sor.u32 %s178, %s179
      %p181 = scmp.eq.s32.totalorder %s180, 0
      %s183 = sadd.s32 %s182, 1
      %s184 = scalar_select %p181, %s182, %s183
      %p187 = pneg %p181
      %p188 = scmp.eq.s32.totalorder %s24, 1
      %p189 = por %p187, %p188
      %p190 = scmp.ne.s32.totalorder %s182, %s185
      %p191 = scmp.eq.s32.totalorder %s24, 0
      %p192 = por %p190, %p191
      %p193 = scmp.ne.s32.totalorder %s182, %s185
      %p194 = scmp.eq.s32.totalorder %s29, 1
      %p195 = por %p193, %p194
      %p196 = scmp.ne.s32.totalorder %s185, %s186
      %p197 = scmp.eq.s32.totalorder %s29, 0
      %p198 = por %p196, %p197
      %p199 = scmp.ne.s32.totalorder %s185, %s186
      %p200 = scmp.eq.s32.totalorder %s30, 1
      %p201 = por %p199, %p200
      %p203 = scmp.ne.s32.totalorder %s186, %s202
      %p204 = scmp.eq.s32.totalorder %s30, 0
      %p205 = por %p203, %p204
      %s206 = ssub.s32 %s32, %s39
      %s207 = ssub.s32 %s31, %s43
      %s208 = sor.u32 %s206, %s207
      %p209 = scmp.eq.s32.totalorder %s208, 0
      %s211 = sadd.s32 %s210, 1
      %s212 = scalar_select %p209, %s210, %s211
      %p215 = pneg %p209
      %p216 = scmp.eq.s32.totalorder %s24, 1
      %p217 = por %p215, %p216
      %p218 = scmp.ne.s32.totalorder %s210, %s213
      %p219 = scmp.eq.s32.totalorder %s24, 0
      %p220 = por %p218, %p219
      %p221 = scmp.ne.s32.totalorder %s210, %s213
      %p222 = scmp.eq.s32.totalorder %s29, 1
      %p223 = por %p221, %p222
      %p224 = scmp.ne.s32.totalorder %s213, %s214
      %p225 = scmp.eq.s32.totalorder %s29, 0
      %p226 = por %p224, %p225
      %p227 = scmp.ne.s32.totalorder %s213, %s214
      %p228 = scmp.eq.s32.totalorder %s30, 1
      %p229 = por %p227, %p228
      %p231 = scmp.ne.s32.totalorder %s214, %s230
      %p232 = scmp.eq.s32.totalorder %s30, 0
      %p233 = por %p231, %p232
      %p234 = scmp.le.s32.totalorder 1, %s24
      %p235 = scmp.lt.s32.totalorder %s24, 3
      %p236 = pnand %p234, %p235
      %p237 = pneg %p236
      // Predicated region
      $region9: #{tpu_custom_call.1} parent=5 // pred_check
        _
      $region10: #{tpu_custom_call.1} parent=5 // pred_check_branch
        %239 = sbr.rel (%p236) target = $region12
      $region11: #{tpu_custom_call.1} parent=5 // pred_region
        %s240 = ssub.s32 %s24, 1
        // Predicated region
        $region13: #{tpu_custom_call.1} parent=11 // pred_check
          %p241 = pneg %p62
        $region14: #{tpu_custom_call.1} parent=11 // pred_check_branch
          %243 = sbr.rel (%p241) target = $region16
        $region15: #{tpu_custom_call.1} parent=11 // pred_region
          %245 = vsyncadd [#allocation3], 0
          %s246 = smul.addr %s33, 2
          %s247 = scalar_lea.hbm %s0, %s246
          %s249 = sshll.u32 %s247, 4
          %s250 = int_to_ptr.hbm [resolvable:$true] %s249
          %s251 = sshll.u32 [#allocation2], 4
          %s252 = int_to_ptr.vmem [resolvable:$true] %s251
          %254 = dma.hbm_to_vmem [thread:$0]  %s250, 32, %s252, [#allocation3]
        $region16: #{tpu_custom_call.1} parent=11 // pred_fallthru
          _
        // Predicated region
        $region17: #{tpu_custom_call.1} parent=11 // pred_check
          %p255 = pneg %p88
        $region18: #{tpu_custom_call.1} parent=11 // pred_check_branch
          %257 = sbr.rel (%p255) target = $region20
        $region19: #{tpu_custom_call.1} parent=11 // pred_region
          %259 = vsyncadd [#allocation6], 0
          %s260 = smul.addr %s33, 2
          %s261 = scalar_lea.hbm %s1, %s260
          %s263 = sshll.u32 %s261, 4
          %s264 = int_to_ptr.hbm [resolvable:$true] %s263
          %s265 = sshll.u32 [#allocation5], 4
          %s266 = int_to_ptr.vmem [resolvable:$true] %s265
          %268 = dma.hbm_to_vmem [thread:$0]  %s264, 32, %s266, [#allocation6]
        $region20: #{tpu_custom_call.1} parent=11 // pred_fallthru
          _
        // Predicated region
        $region21: #{tpu_custom_call.1} parent=11 // pred_check
          %p269 = pneg %p114
        $region22: #{tpu_custom_call.1} parent=11 // pred_check_branch
          %271 = sbr.rel (%p269) target = $region24
        $region23: #{tpu_custom_call.1} parent=11 // pred_region
          %273 = vsyncadd [#allocation6], 0
          %s274 = smul.addr %s33, 2
          %s275 = scalar_lea.hbm %s2, %s274
          %s277 = sshll.u32 %s275, 4
          %s278 = int_to_ptr.hbm [resolvable:$true] %s277
          %s279 = sshll.u32 [#allocation7], 4
          %s280 = int_to_ptr.vmem [resolvable:$true] %s279
          %282 = dma.hbm_to_vmem [thread:$0]  %s278, 32, %s280, [#allocation6]
        $region24: #{tpu_custom_call.1} parent=11 // pred_fallthru
          _
      $region12: #{tpu_custom_call.1} parent=5 // pred_fallthru
        _
      %p283 = scmp.lt.s32.totalorder %s24, 2
      // Predicated region
      $region25: #{tpu_custom_call.1} parent=5 // pred_check
        %p284 = pneg %p283
      $region26: #{tpu_custom_call.1} parent=5 // pred_check_branch
        %286 = sbr.rel (%p284) target = $region28
      $region27: #{tpu_custom_call.1} parent=5 // pred_region
        // Predicated region
        $region29: #{tpu_custom_call.1} parent=27 // pred_check
          %p287 = pneg %p136
        $region30: #{tpu_custom_call.1} parent=27 // pred_check_branch
          %289 = sbr.rel (%p287) target = $region32
        $region31: #{tpu_custom_call.1} parent=27 // pred_region
          %s290 = sand.u32 %s24, 1
          %s291 = scalar_lea.sflag [#allocation9], %s290
          %s292 = sand.u32 %s126, 1
          %s293 = smul.addr %s292, 2
          %s294 = scalar_lea.vmem [#allocation8], %s293
          %296 = vsyncadd %s291, 0
          %s297 = sadd.s32 %s31, %s32
          %s298 = smul.addr %s297, 2
          %s299 = scalar_lea.hbm %s3, %s298
          %s301 = sshll.u32 %s299, 4
          %s302 = int_to_ptr.hbm [resolvable:$true] %s301
          %s303 = sshll.u32 %s294, 4
          %s304 = int_to_ptr.vmem [resolvable:$true] %s303
          %306 = dma.hbm_to_vmem [thread:$0]  %s302, 32, %s304, %s291
        $region32: #{tpu_custom_call.1} parent=27 // pred_fallthru
          _
        // Predicated region
        $region33: #{tpu_custom_call.1} parent=27 // pred_check
          %p307 = pneg %p164
        $region34: #{tpu_custom_call.1} parent=27 // pred_check_branch
          %309 = sbr.rel (%p307) target = $region36
        $region35: #{tpu_custom_call.1} parent=27 // pred_region
          %s310 = sand.u32 %s24, 1
          %s311 = scalar_lea.sflag [#allocation9], %s310
          %s312 = sand.u32 %s154, 1
          %s313 = smul.addr %s312, 2
          %s314 = scalar_lea.vmem [#allocation10], %s313
          %316 = vsyncadd %s311, 0
          %s317 = sadd.s32 %s31, %s32
          %s318 = smul.addr %s317, 2
          %s319 = scalar_lea.hbm %s4, %s318
          %s321 = sshll.u32 %s319, 4
          %s322 = int_to_ptr.hbm [resolvable:$true] %s321
          %s323 = sshll.u32 %s314, 4
          %s324 = int_to_ptr.vmem [resolvable:$true] %s323
          %326 = dma.hbm_to_vmem [thread:$0]  %s322, 32, %s324, %s311
        $region36: #{tpu_custom_call.1} parent=27 // pred_fallthru
          _
      $region28: #{tpu_custom_call.1} parent=5 // pred_fallthru
        _
      %p327 = scmp.le.s32.totalorder 1, %s24
      %p328 = scmp.lt.s32.totalorder %s24, 3
      %p329 = pnand %p327, %p328
      %p330 = pneg %p329
      // Predicated region
      $region37: #{tpu_custom_call.1} parent=5 // pred_check
        _
      $region38: #{tpu_custom_call.1} parent=5 // pred_check_branch
        %332 = sbr.rel (%p329) target = $region40
      $region39: #{tpu_custom_call.1} parent=5 // pred_region
        %s333 = ssub.s32 %s24, 1
        // Predicated region
        $region41: #{tpu_custom_call.1} parent=39 // pred_check
          %p334 = pneg %p62
        $region42: #{tpu_custom_call.1} parent=39 // pred_check_branch
          %336 = sbr.rel (%p334) target = $region44
        $region43: #{tpu_custom_call.1} parent=39 // pred_region
          %338 = dma.done [#allocation3], 32
        $region44: #{tpu_custom_call.1} parent=39 // pred_fallthru
          _
        // Predicated region
        $region45: #{tpu_custom_call.1} parent=39 // pred_check
          %p339 = pneg %p88
        $region46: #{tpu_custom_call.1} parent=39 // pred_check_branch
          %341 = sbr.rel (%p339) target = $region48
        $region47: #{tpu_custom_call.1} parent=39 // pred_region
          %343 = dma.done [#allocation6], 32
        $region48: #{tpu_custom_call.1} parent=39 // pred_fallthru
          _
        // Predicated region
        $region49: #{tpu_custom_call.1} parent=39 // pred_check
          %p344 = pneg %p114
        $region50: #{tpu_custom_call.1} parent=39 // pred_check_branch
          %346 = sbr.rel (%p344) target = $region52
        $region51: #{tpu_custom_call.1} parent=39 // pred_region
          %348 = dma.done [#allocation6], 32
        $region52: #{tpu_custom_call.1} parent=39 // pred_fallthru
          _
        %s349 = sand.u32 %s29, 1
        %s350 = scalar_lea.sflag [#allocation9], %s349
        %s351 = sand.u32 %s129, 1
        %s352 = smul.addr %s351, 2
        %s353 = scalar_lea.vmem [#allocation8], %s352
        // Predicated region
        $region53: #{tpu_custom_call.1} parent=39 // pred_check
          %p354 = pneg %p142
        $region54: #{tpu_custom_call.1} parent=39 // pred_check_branch
          %356 = sbr.rel (%p354) target = $region56
        $region55: #{tpu_custom_call.1} parent=39 // pred_region
          %358 = dma.done %s350, 32
        $region56: #{tpu_custom_call.1} parent=39 // pred_fallthru
          _
        %s359 = sand.u32 %s29, 1
        %s360 = scalar_lea.sflag [#allocation9], %s359
        %s361 = sand.u32 %s157, 1
        %s362 = smul.addr %s361, 2
        %s363 = scalar_lea.vmem [#allocation10], %s362
        // Predicated region
        $region57: #{tpu_custom_call.1} parent=39 // pred_check
          %p364 = pneg %p170
        $region58: #{tpu_custom_call.1} parent=39 // pred_check_branch
          %366 = sbr.rel (%p364) target = $region60
        $region59: #{tpu_custom_call.1} parent=39 // pred_region
          %368 = dma.done %s360, 32
        $region60: #{tpu_custom_call.1} parent=39 // pred_fallthru
          _
        %p369 = pneg %p62
        %p370 = pneg %p59
        %p371 = pneg %p88
        %p372 = pneg %p85
        %p373 = pneg %p114
        %p374 = pneg %p111
        %s375 = sand.u32 %s29, 1
        %s376 = scalar_lea.sflag [#allocation9], %s375
        %s377 = sand.u32 %s129, 1
        %s378 = smul.addr %s377, 2
        %s379 = scalar_lea.vmem [#allocation8], %s378
        %p380 = pneg %p142
        %p381 = pneg %p139
        %s382 = sand.u32 %s29, 1
        %s383 = scalar_lea.sflag [#allocation9], %s382
        %s384 = sand.u32 %s157, 1
        %s385 = smul.addr %s384, 2
        %s386 = scalar_lea.vmem [#allocation10], %s385
        %p387 = pneg %p170
        %p388 = pneg %p167
        %p389 = pneg %p198
        %p390 = pneg %p195
        %s391 = sand.u32 %s185, 1
        %s392 = scalar_lea.sflag [#allocation4], %s391
        %s393 = sand.u32 %s185, 1
        %s394 = smul.addr %s393, 2
        %s395 = scalar_lea.vmem [#allocation11], %s394
        %p396 = pneg %p226
        %p397 = pneg %p223
        %s398 = sand.u32 %s213, 1
        %s399 = scalar_lea.sflag [#allocation13], %s398
        %s400 = sand.u32 %s213, 1
        %s401 = smul.addr %s400, 2
        %s402 = scalar_lea.vmem [#allocation12], %s401
        %v403 = vld [vmem:[#allocation2] sm:$0x3]
        %v404 = vld [vmem:[#allocation5] sm:$0x3]
        %v405 = vld [vmem:[#allocation7] sm:$0x3]
        %v406 = vld [vmem:[%s353] sm:$0x3]
        %407 = vrot.lane.b32.xlu0 %v406, 16
        %v408 = vpop.permute.xlu0 %407
        %409 = vrot.lane.b32.xlu0 %v406, 112
        %v410 = vpop.permute.xlu0 %409
        %v411 = vmul.f32 %v406, %v403
        %v412 = vmul.f32 %v410, %v404
        %v413 = vadd.f32 %v411, %v412
        %v414 = vmul.f32 %v408, %v405
        %v415 = vadd.f32 %v413, %v414
        %416 = vst [vmem:[%s395] sm:$0x3] %v415
        %v417 = vld [vmem:[%s363] sm:$0x3]
        %418 = vrot.lane.b32.xlu0 %v417, 16
        %v419 = vpop.permute.xlu0 %418
        %420 = vrot.lane.b32.xlu0 %v417, 112
        %v421 = vpop.permute.xlu0 %420
        %v422 = vmul.f32 %v417, %v403
        %v423 = vmul.f32 %v421, %v404
        %v424 = vadd.f32 %v422, %v423
        %v425 = vmul.f32 %v419, %v405
        %v426 = vadd.f32 %v424, %v425
        %427 = vst [vmem:[%s402] sm:$0x3] %v426
        %s428 = sand.u32 %s185, 1
        %s429 = scalar_lea.sflag [#allocation4], %s428
        %s430 = sand.u32 %s185, 1
        %s431 = smul.addr %s430, 2
        %s432 = scalar_lea.vmem [#allocation11], %s431
        %s433 = sand.u32 %s213, 1
        %s434 = scalar_lea.sflag [#allocation13], %s433
        %s435 = sand.u32 %s213, 1
        %s436 = smul.addr %s435, 2
        %s437 = scalar_lea.vmem [#allocation12], %s436
        // Predicated region
        $region61: #{tpu_custom_call.1} parent=39 // pred_check
          %p438 = pneg %p195
        $region62: #{tpu_custom_call.1} parent=39 // pred_check_branch
          %440 = sbr.rel (%p438) target = $region64
        $region63: #{tpu_custom_call.1} parent=39 // pred_region
          %442 = vsyncadd %s429, 0
          %s443 = sadd.s32 %s33, %s34
          %s444 = smul.addr %s443, 2
          %s445 = scalar_lea.hbm %s5, %s444
          %s447 = sshll.u32 %s432, 4
          %s448 = int_to_ptr.vmem [resolvable:$true] %s447
          %s449 = sshll.u32 %s445, 4
          %s450 = int_to_ptr.hbm [resolvable:$true] %s449
          %452 = dma.vmem_to_hbm [thread:$0]  %s448, 32, %s450, %s429
        $region64: #{tpu_custom_call.1} parent=39 // pred_fallthru
          _
        // Predicated region
        $region65: #{tpu_custom_call.1} parent=39 // pred_check
          %p453 = pneg %p223
        $region66: #{tpu_custom_call.1} parent=39 // pred_check_branch
          %455 = sbr.rel (%p453) target = $region68
        $region67: #{tpu_custom_call.1} parent=39 // pred_region
          %457 = vsyncadd %s434, 0
          %s458 = sadd.s32 %s33, %s34
          %s459 = smul.addr %s458, 2
          %s460 = scalar_lea.hbm %s6, %s459
          %s462 = sshll.u32 %s437, 4
          %s463 = int_to_ptr.vmem [resolvable:$true] %s462
          %s464 = sshll.u32 %s460, 4
          %s465 = int_to_ptr.hbm [resolvable:$true] %s464
          %467 = dma.vmem_to_hbm [thread:$0]  %s463, 32, %s465, %s434
        $region68: #{tpu_custom_call.1} parent=39 // pred_fallthru
          _
      $region40: #{tpu_custom_call.1} parent=5 // pred_fallthru
        _
      %p468 = scmp.le.s32.totalorder 2, %s24
      // Predicated region
      $region69: #{tpu_custom_call.1} parent=5 // pred_check
        %p469 = pneg %p468
      $region70: #{tpu_custom_call.1} parent=5 // pred_check_branch
        %471 = sbr.rel (%p469) target = $region72
      $region71: #{tpu_custom_call.1} parent=5 // pred_region
        %s472 = ssub.s32 %s24, 2
        // Predicated region
        $region73: #{tpu_custom_call.1} parent=71 // pred_check
          %p473 = pneg %p201
        $region74: #{tpu_custom_call.1} parent=71 // pred_check_branch
          %475 = sbr.rel (%p473) target = $region76
        $region75: #{tpu_custom_call.1} parent=71 // pred_region
          %s476 = sand.u32 %s186, 1
          %s477 = scalar_lea.sflag [#allocation4], %s476
          %s478 = sand.u32 %s186, 1
          %s479 = smul.addr %s478, 2
          %s480 = scalar_lea.vmem [#allocation11], %s479
          %482 = dma.done %s477, 32
        $region76: #{tpu_custom_call.1} parent=71 // pred_fallthru
          _
        // Predicated region
        $region77: #{tpu_custom_call.1} parent=71 // pred_check
          %p483 = pneg %p229
        $region78: #{tpu_custom_call.1} parent=71 // pred_check_branch
          %485 = sbr.rel (%p483) target = $region80
        $region79: #{tpu_custom_call.1} parent=71 // pred_region
          %s486 = sand.u32 %s214, 1
          %s487 = scalar_lea.sflag [#allocation13], %s486
          %s488 = sand.u32 %s214, 1
          %s489 = smul.addr %s488, 2
          %s490 = scalar_lea.vmem [#allocation12], %s489
          %492 = dma.done %s487, 32
        $region80: #{tpu_custom_call.1} parent=71 // pred_fallthru
          _
      $region72: #{tpu_custom_call.1} parent=5 // pred_fallthru
        _
    $region6: #{tpu_custom_call.1} parent=1 // loop_footer
      %s28 = sadd.s32 1, %s24
    $region7: #{tpu_custom_call.1} parent=1 // loop_footer_branch
      %23 = sbr.rel target = $region3
    $region8: #{tpu_custom_call.1} parent=1 // loop_exit
      _
    %493 = vsyncpa [#allocation3], 1
    %s494 = scalar_lea.sflag [#allocation3], 1
    %495 = vsyncpa %s494, 1
    %496 = vsyncpa [#allocation6], 1
    %497 = vsyncpa [#allocation9], 1
    %s498 = scalar_lea.sflag [#allocation9], 1
    %499 = vsyncpa %s498, 1
    %500 = vsyncpa [#allocation4], 1
    %s501 = scalar_lea.sflag [#allocation4], 1
    %502 = vsyncpa %s501, 1
    %503 = vsyncpa [#allocation13], 1
    %s504 = scalar_lea.sflag [#allocation13], 1
    %505 = vsyncpa %s504, 1

</llo_original>
